<compile_context>
chip_gen: v6e
topology: v6e:2x2x1
jax: 0.10.0
libtpu: 0.0.40
codegen_flags: <defaults>
</compile_context>

<pallas_src>
import jax
import jax.numpy as jnp
from jax.experimental import pallas as pl
from jax.experimental.pallas import tpu as pltpu


def _generator_kernel(x_ref, w_ref, b_ref, o_ref):
    # x_ref : (TB, seq_num, TL)   activations for TB batch elements
    # w_ref : (seq_num, out_dim)  == W.T of the nn.Linear weight (resident)
    # b_ref : (1, out_dim)        bias (resident)
    # o_ref : (TB, TL, out_dim)
    w = w_ref[...]
    bias = b_ref[...].astype(jnp.float32)          # broadcasts over TL
    tb = x_ref.shape[0]
    for b in range(tb):                            # static, unrolled (TB small)
        xb = x_ref[b]                              # (seq_num, TL)
        # (TL, out_dim): contract seq_num of x (axis 0) with seq_num of W^T.
        y = jax.lax.dot_general(
            xb, w,
            dimension_numbers=(((0,), (0,)), ((), ())),
            preferred_element_type=jnp.float32,
        )
        o_ref[b] = (y + bias).astype(o_ref.dtype)


def _pick_l_tile(L):
    # Largest lane-aligned tile that divides L (512-2048 sweet spot for HBM
    # roofline); small / odd L falls back to a single full block.
    for t in (2048, 1024, 512, 256, 128):
        if L % t == 0:
            return t
    return L


def _pick_b_tile(B, per_batch_block_bytes, budget_bytes=4 * 1024 * 1024):
    # Batch several elements per grid step to amortize per-step overhead,
    # while keeping the double-buffered block footprint small (v7x headroom).
    for t in (8, 4, 2, 1):
        if B % t == 0 and t * per_batch_block_bytes <= budget_bytes:
            return t
    return 1


def generator_forward(x, weight, bias):
    """x: (B, seq_num, L); weight: (out_dim, seq_num); bias: (out_dim,)."""
    B, seq_num, L = x.shape
    out_dim = weight.shape[0]
    itemsize = x.dtype.itemsize

    TL = _pick_l_tile(L)
    per_batch_bytes = (seq_num * TL + TL * out_dim) * itemsize
    TB = _pick_b_tile(B, per_batch_bytes)

    w_t = weight.T.astype(x.dtype)                 # (seq_num, out_dim), tiny
    b2 = bias.reshape(1, out_dim)

    grid = (B // TB, L // TL)

    cost = pl.CostEstimate(
        flops=2 * B * L * seq_num * out_dim,
        transcendentals=0,
        bytes_accessed=(x.size + w_t.size + b2.size + B * L * out_dim) * itemsize,
    )

    return pl.pallas_call(
        _generator_kernel,
        out_shape=jax.ShapeDtypeStruct((B, L, out_dim), x.dtype),
        grid_spec=pltpu.PrefetchScalarGridSpec(
            num_scalar_prefetch=0,
            grid=grid,
            in_specs=[
                pl.BlockSpec((TB, seq_num, TL), lambda b, l: (b, 0, l)),
                pl.BlockSpec((seq_num, out_dim), lambda b, l: (0, 0)),
                pl.BlockSpec((1, out_dim), lambda b, l: (0, 0)),
            ],
            out_specs=pl.BlockSpec((TB, TL, out_dim), lambda b, l: (b, l, 0)),
        ),
        compiler_params=pltpu.CompilerParams(
            dimension_semantics=("parallel", "parallel"),
            vmem_limit_bytes=32 * 1024 * 1024,
        ),
        cost_estimate=cost,
    )(x, w_t, b2)


if __name__ == "__main__":
    # Small shapes consistent with the module: x = (batch, seq_num, L)
    B, seq_num, L, out_dim = 2, 8, 16, 32

    key = jax.random.PRNGKey(0)
    kx, kw, kb = jax.random.split(key, 3)

    x = jax.random.normal(kx, (B, seq_num, L), dtype=jnp.float32)

    # Deterministic init mimicking nn.Linear: U(-1/sqrt(in), 1/sqrt(in))
    bound = 1.0 / (seq_num ** 0.5)
    weight = jax.random.uniform(kw, (out_dim, seq_num), jnp.float32, -bound, bound)
    bias = jax.random.uniform(kb, (out_dim,), jnp.float32, -bound, bound)

    out = generator_forward(x, weight, bias)
    out = jax.block_until_ready(out)

    # Reference: Linear(x.transpose(1, 2))
    ref = jnp.einsum("bsl,os->blo", x, weight) + bias
    assert out.shape == (B, L, out_dim)
    assert jnp.allclose(out, ref, atol=1e-5, rtol=1e-5)

    print("KERNEL_OK")
</pallas_src>

<mosaic_0001>
module attributes {stable_mosaic.version = 11 : i64} {
  func.func @_generator_kernel(%arg0: i32, %arg1: i32, %arg2: memref<2x8x16xf32, #tpu.memory_space<vmem>>, %arg3: memref<8x32xf32, #tpu.memory_space<vmem>>, %arg4: memref<1x32xf32, #tpu.memory_space<vmem>>, %arg5: memref<2x16x32xf32, #tpu.memory_space<vmem>>) attributes {dimension_semantics = [#tpu.dimension_semantics<parallel>, #tpu.dimension_semantics<parallel>], iteration_bounds = array<i64: 1, 1>, scalar_prefetch = 0 : i64, scratch_operands = 0 : i64, tpu.core_type = #tpu.core_type<tc>, window_params = [{transform_indices = @transform_0, window_bounds = array<i64: 2, 8, 16>}, {pipeline_mode = #tpu.pipeline_mode<synchronous>, transform_indices = @transform_1, window_bounds = array<i64: 8, 32>}, {pipeline_mode = #tpu.pipeline_mode<synchronous>, transform_indices = @transform_2, window_bounds = array<i64: 1, 32>}, {transform_indices = @transform_3, window_bounds = array<i64: 2, 16, 32>}]} {
    %c0 = arith.constant 0 : index
    %c0_0 = arith.constant 0 : index
    %0 = vector.load %arg3[%c0, %c0_0] : memref<8x32xf32, #tpu.memory_space<vmem>>, vector<8x32xf32>
    %c0_1 = arith.constant 0 : index
    %c0_2 = arith.constant 0 : index
    %1 = vector.load %arg4[%c0_1, %c0_2] : memref<1x32xf32, #tpu.memory_space<vmem>>, vector<1x32xf32>
    %c0_3 = arith.constant 0 : index
    %c0_4 = arith.constant 0 : index
    %c0_5 = arith.constant 0 : index
    %2 = vector.load %arg2[%c0_3, %c0_4, %c0_5] : memref<2x8x16xf32, #tpu.memory_space<vmem>>, vector<1x8x16xf32>
    %3 = vector.shape_cast %2 : vector<1x8x16xf32> to vector<8x16xf32>
    %cst = arith.constant dense<0.000000e+00> : vector<16x32xf32>
    %4 = tpu.matmul %3, %0, %cst {dimension_numbers = #tpu.dot_dimension_numbers<[0], [0], [1], [1], [0, 1, 1, 1], [], []>} : vector<8x16xf32>, vector<8x32xf32>, vector<16x32xf32> -> vector<16x32xf32>
    %5 = vector.broadcast %1 : vector<1x32xf32> to vector<16x32xf32>
    %6 = arith.addf %4, %5 : vector<16x32xf32>
    %c0_6 = arith.constant 0 : index
    %c0_7 = arith.constant 0 : index
    %c0_8 = arith.constant 0 : index
    %7 = vector.load %arg5[%c0_6, %c0_7, %c0_8] : memref<2x16x32xf32, #tpu.memory_space<vmem>>, vector<1x16x32xf32>
    %8 = vector.shape_cast %7 : vector<1x16x32xf32> to vector<16x32xf32>
    %9 = vector.shape_cast %6 : vector<16x32xf32> to vector<1x16x32xf32>
    tpu.vector_store %arg5[%c0_6, %c0_7, %c0_8], %9 {strides = array<i32>} : memref<2x16x32xf32, #tpu.memory_space<vmem>>, vector<1x16x32xf32>,
    %c1 = arith.constant 1 : index
    %c0_9 = arith.constant 0 : index
    %c0_10 = arith.constant 0 : index
    %10 = vector.load %arg2[%c1, %c0_9, %c0_10] : memref<2x8x16xf32, #tpu.memory_space<vmem>>, vector<1x8x16xf32>
    %11 = vector.shape_cast %10 : vector<1x8x16xf32> to vector<8x16xf32>
    %cst_11 = arith.constant dense<0.000000e+00> : vector<16x32xf32>
    %12 = tpu.matmul %11, %0, %cst_11 {dimension_numbers = #tpu.dot_dimension_numbers<[0], [0], [1], [1], [0, 1, 1, 1], [], []>} : vector<8x16xf32>, vector<8x32xf32>, vector<16x32xf32> -> vector<16x32xf32>
    %13 = vector.broadcast %1 : vector<1x32xf32> to vector<16x32xf32>
    %14 = arith.addf %12, %13 : vector<16x32xf32>
    %c1_12 = arith.constant 1 : index
    %c0_13 = arith.constant 0 : index
    %c0_14 = arith.constant 0 : index
    %15 = vector.load %arg5[%c1_12, %c0_13, %c0_14] : memref<2x16x32xf32, #tpu.memory_space<vmem>>, vector<1x16x32xf32>
    %16 = vector.shape_cast %15 : vector<1x16x32xf32> to vector<16x32xf32>
    %17 = vector.shape_cast %14 : vector<16x32xf32> to vector<1x16x32xf32>
    tpu.vector_store %arg5[%c1_12, %c0_13, %c0_14], %17 {strides = array<i32>} : memref<2x16x32xf32, #tpu.memory_space<vmem>>, vector<1x16x32xf32>,
    return
  }
  func.func @transform_0(%arg0: i32, %arg1: i32) -> (i32, i32, i32) {
    %c0_i32 = arith.constant 0 : i32
    %c0_i32_0 = arith.constant 0 : i32
    return %arg0, %c0_i32, %arg1 : i32, i32, i32
  }
  func.func @transform_1(%arg0: i32, %arg1: i32) -> (i32, i32) {
    %c0_i32 = arith.constant 0 : i32
    %c0_i32_0 = arith.constant 0 : i32
    %c0_i32_1 = arith.constant 0 : i32
    return %c0_i32, %c0_i32_0 : i32, i32
  }
  func.func @transform_2(%arg0: i32, %arg1: i32) -> (i32, i32) {
    %c0_i32 = arith.constant 0 : i32
    %c0_i32_0 = arith.constant 0 : i32
    %c0_i32_1 = arith.constant 0 : i32
    return %c0_i32, %c0_i32_0 : i32, i32
  }
  func.func @transform_3(%arg0: i32, %arg1: i32) -> (i32, i32, i32) {
    %c0_i32 = arith.constant 0 : i32
    %c0_i32_0 = arith.constant 0 : i32
    return %arg0, %arg1, %c0_i32 : i32, i32, i32
  }
}

</mosaic_0001>

<llo_original>
// kernel: tpu_custom_call.1
$region0: #{tpu_custom_call.1}
  #allocation0 [shape = 'u32[]', space=smem, size = 0x4, offset = 0x4, fixed_abs, tag = 'smem constant byte address 0x4 - core index']
  #allocation1 [shape = 'u32[144,128]{1,0:T(1,128)}', space=vmem, size = 0x12000, scoped, tag = 'internal scratch']
  %s0 = inlined_call_operand.hbm [shape: f32[2,8,16], index: 0, kind: input, shape index: {}]
  %s1 = inlined_call_operand.hbm [shape: f32[8,32], index: 1, kind: input, shape index: {}]
  %s2 = inlined_call_operand.vmem [shape: f32[1,32], index: 2, kind: input, shape index: {}]
  %s3 = inlined_call_operand.hbm [shape: f32[2,16,32], index: 3, kind: output, shape index: {}]
  %s4 = sld [smem:[#allocation0]]
  $region30: #{tpu_custom_call.1} parent=0
    _
  %s6 = ssub.s32 1, %s4
  %s7 = scalar_select 0, %s6, %s4
  $region1: #{tpu_custom_call.1} parent=0
    #allocation2 [shape = 'u8[8192]{0}', space=vmem, size = 0x2000, scoped, tag = 'input window, operand 0, single buffered']
    #allocation3 [shape = 's32[1]{0}', space=sflag, size = 0x4, scoped, tag = 'scoped memory for tpu_custom_call.1']
    #allocation4 [shape = 's32[1]{0}', space=sflag, size = 0x4, scoped, tag = 'scoped memory for tpu_custom_call.1']
    #allocation5 [shape = 'u8[4096]{0}', space=vmem, size = 0x1000, scoped, tag = 'input window, operand 1, single buffered']
    #allocation6 [shape = 's32[1]{0}', space=sflag, size = 0x4, scoped, tag = 'scoped memory for tpu_custom_call.1']
    #allocation7 [shape = 'u8[16384]{0}', space=vmem, size = 0x4000, scoped, tag = 'output window, operand 0, single buffered']
    %8 = vsyncpa [#allocation3], 0
    %9 = vsyncpa [#allocation6], 0
    %10 = vsyncpa [#allocation4], 0
    // Predicated region
    $region2: #{tpu_custom_call.1} parent=1 // pred_check
      _
    $region3: #{tpu_custom_call.1} parent=1 // pred_check_branch
      %12 = sbr.rel (0) target = $region5
    $region4: #{tpu_custom_call.1} parent=1 // pred_region
      %s14 = ssub.s32 256, 256
      %15 = vsyncadd [#allocation3], %s14
      %s16 = sshll.u32 [#allocation2], 4
      %s17 = int_to_ptr.vmem [resolvable:$true] %s16
      %22 = dma.hbm_to_vmem [thread:$0]  %s0, 256, %s17, [#allocation3], 128, 128, 8
    $region5: #{tpu_custom_call.1} parent=1 // pred_fallthru
      _
    // Predicated region
    $region6: #{tpu_custom_call.1} parent=1 // pred_check
      _
    $region7: #{tpu_custom_call.1} parent=1 // pred_check_branch
      %24 = sbr.rel (0) target = $region9
    $region8: #{tpu_custom_call.1} parent=1 // pred_region
      %s26 = ssub.s32 128, 128
      %27 = vsyncadd [#allocation6], %s26
      %s29 = sshll.u32 [#allocation5], 4
      %s30 = int_to_ptr.vmem [resolvable:$true] %s29
      %32 = dma.hbm_to_vmem [thread:$0]  %s1, 128, %s30, [#allocation6]
    $region9: #{tpu_custom_call.1} parent=1 // pred_fallthru
      _
    // Predicated region
    $region10: #{tpu_custom_call.1} parent=1 // pred_check
      _
    $region11: #{tpu_custom_call.1} parent=1 // pred_check_branch
      %34 = sbr.rel (0) target = $region13
    $region12: #{tpu_custom_call.1} parent=1 // pred_region
      _
    $region13: #{tpu_custom_call.1} parent=1 // pred_fallthru
      _
    // Predicated region
    $region14: #{tpu_custom_call.1} parent=1 // pred_check
      _
    $region15: #{tpu_custom_call.1} parent=1 // pred_check_branch
      %36 = sbr.rel (0) target = $region17
    $region16: #{tpu_custom_call.1} parent=1 // pred_region
      %37 = dma.done [#allocation3], 256
    $region17: #{tpu_custom_call.1} parent=1 // pred_fallthru
      _
    // Predicated region
    $region18: #{tpu_custom_call.1} parent=1 // pred_check
      _
    $region19: #{tpu_custom_call.1} parent=1 // pred_check_branch
      %39 = sbr.rel (0) target = $region21
    $region20: #{tpu_custom_call.1} parent=1 // pred_region
      %40 = dma.done [#allocation6], 128
    $region21: #{tpu_custom_call.1} parent=1 // pred_fallthru
      _
    %v41 = vld [vmem:[#allocation5] sm:$0xff]
    %v42 = vld [vmem:[%s2] sm:$0x1]
    %v43 = vld [vmem:[#allocation2] sm:$0xff]
    %v45 = vlaneseq
    %v46 = vshrl.u32 %v45, 7
    %v47 = vsub.s32 0, %v46
    %v48 = vrot.slane %v42, %v47
    %50 = vxpose.xlu0.b32.start [1/16] %v43, 128
    %51 = vxpose.xlu0.b32.cont [2/16] 0.0, 128
    %52 = vxpose.xlu0.b32.cont [3/16] 0.0, 128
    %53 = vxpose.xlu0.b32.cont [4/16] 0.0, 128
    %54 = vxpose.xlu0.b32.cont [5/16] 0.0, 128
    %55 = vxpose.xlu0.b32.cont [6/16] 0.0, 128
    %56 = vxpose.xlu0.b32.cont [7/16] 0.0, 128
    %57 = vxpose.xlu0.b32.cont [8/16] 0.0, 128
    %58 = vxpose.xlu0.b32.cont [9/16] 0.0, 128
    %59 = vxpose.xlu0.b32.cont [10/16] 0.0, 128
    %60 = vxpose.xlu0.b32.cont [11/16] 0.0, 128
    %61 = vxpose.xlu0.b32.cont [12/16] 0.0, 128
    %62 = vxpose.xlu0.b32.cont [13/16] 0.0, 128
    %63 = vxpose.xlu0.b32.cont [14/16] 0.0, 128
    %64 = vxpose.xlu0.b32.cont [15/16] 0.0, 128
    %65 = vxpose.xlu0.b32.end [16/16] 0.0, 128
    %v66 = vpop.trf.xlu0
    %v67 = vpop.trf.xlu0
    %v68 = vpop.trf.xlu0
    %v69 = vpop.trf.xlu0
    %v70 = vpop.trf.xlu0
    %v71 = vpop.trf.xlu0
    %v72 = vpop.trf.xlu0
    %v73 = vpop.trf.xlu0
    %v74 = vpop.trf.xlu0
    %v75 = vpop.trf.xlu0
    %v76 = vpop.trf.xlu0
    %v77 = vpop.trf.xlu0
    %v78 = vpop.trf.xlu0
    %v79 = vpop.trf.xlu0
    %v80 = vpop.trf.xlu0
    %v81 = vpop.trf.xlu0
    %vm82 = vcmask 64512
    %v84 = vsel %vm82, %v66, 0
    %v87 = vsel %vm82, %v67, 0
    %89 = vmatprep.subr.mxu0 0.0
    %90 = vmatpush1.msra.mxu0 0.0
    %91 = vmatprep.subr.mxu0 0.0
    %92 = vmatpush1.msra.mxu0 0.0
    %93 = vmatprep.subr.mxu0 0.0
    %94 = vmatpush1.msra.mxu0 0.0
    %95 = vmatprep.subr.mxu0 0.0
    %96 = vmatpush1.msra.mxu0 0.0
    %97 = vmatprep.subr.mxu0 0.0
    %98 = vmatpush1.msra.mxu0 0.0
    %99 = vmatprep.subr.mxu0 0.0
    %100 = vmatpush1.msra.mxu0 0.0
    %101 = vmatprep.subr.mxu0 0.0
    %102 = vmatpush1.msra.mxu0 0.0
    %103 = vmatprep.subr.mxu0 0.0
    %104 = vmatpush1.msra.mxu0 0.0
    %105 = vmatprep.subr.mxu0 0.0
    %106 = vmatpush1.msra.mxu0 0.0
    %107 = vmatprep.subr.mxu0 0.0
    %108 = vmatpush1.msra.mxu0 0.0
    %109 = vmatprep.subr.mxu0 0.0
    %110 = vmatpush1.msra.mxu0 0.0
    %111 = vmatprep.subr.mxu0 0.0
    %112 = vmatpush1.msra.mxu0 0.0
    %113 = vmatprep.subr.mxu0 0.0
    %114 = vmatpush1.msra.mxu0 0.0
    %115 = vmatprep.subr.mxu0 0.0
    %116 = vmatpush1.msra.mxu0 0.0
    %117 = vmatprep.subr.mxu0 0.0
    %118 = vmatpush1.msra.mxu0 0.0
    %119 = vmatprep.subr.mxu0 0.0
    %120 = vmatpush1.msra.mxu0 %v41
    %121 = vmatprep.subr.mxu0 0.0
    %122 = vmatpush2.msra.mxu0 0.0
    %123 = vmatprep.subr.mxu0 0.0
    %124 = vmatpush2.msra.mxu0 0.0
    %125 = vmatprep.subr.mxu0 0.0
    %126 = vmatpush2.msra.mxu0 0.0
    %127 = vmatprep.subr.mxu0 0.0
    %128 = vmatpush2.msra.mxu0 0.0
    %129 = vmatprep.subr.mxu0 0.0
    %130 = vmatpush2.msra.mxu0 0.0
    %131 = vmatprep.subr.mxu0 0.0
    %132 = vmatpush2.msra.mxu0 0.0
    %133 = vmatprep.subr.mxu0 0.0
    %134 = vmatpush2.msra.mxu0 0.0
    %135 = vmatprep.subr.mxu0 0.0
    %136 = vmatpush2.msra.mxu0 0.0
    %137 = vmatprep.subr.mxu0 0.0
    %138 = vmatpush2.msra.mxu0 0.0
    %139 = vmatprep.subr.mxu0 0.0
    %140 = vmatpush2.msra.mxu0 0.0
    %141 = vmatprep.subr.mxu0 0.0
    %142 = vmatpush2.msra.mxu0 0.0
    %143 = vmatprep.subr.mxu0 0.0
    %144 = vmatpush2.msra.mxu0 0.0
    %145 = vmatprep.subr.mxu0 0.0
    %146 = vmatpush2.msra.mxu0 0.0
    %147 = vmatprep.subr.mxu0 0.0
    %148 = vmatpush2.msra.mxu0 0.0
    %149 = vmatprep.subr.mxu0 0.0
    %150 = vmatpush2.msra.mxu0 0.0
    %151 = vmatprep.subr.mxu0 0.0
    %152 = vmatpush2.msra.mxu0 0.0
    %153 = vmatprep.mubr.f32.mxu0 0.0
    %154 = vmatmul.mubr.f32.gmra.mxu0 %v84
    %v155 = vpop.f32.mrf.mxu0
    %v156 = vadd.f32 %v48, %v155
    %v157 = vpop.f32.mrf.mxu0
    %158 = vmatprep.mubr.f32.mxu0 0.0
    %159 = vmatmul.mubr.f32.gmra.mxu0 %v87
    %v160 = vpop.f32.mrf.mxu0
    %v161 = vadd.f32 %v48, %v160
    %v162 = vpop.f32.mrf.mxu0
    %163 = vdwg.mxu0
    %vm164 = vcmask 261120
    %165 = vst.msk [vmem:[#allocation7] sm:$0xff] %vm164, %v156
    %166 = vst.msk [vmem:[#allocation7 + $0x8] sm:$0xff] %vm164, %v161
    %s167 = scalar_lea.vmem [#allocation2], 8
    %v168 = vld [vmem:[%s167] sm:$0xff]
    %169 = vxpose.xlu0.b32.start [1/16] %v168, 128
    %170 = vxpose.xlu0.b32.cont [2/16] 0.0, 128
    %171 = vxpose.xlu0.b32.cont [3/16] 0.0, 128
    %172 = vxpose.xlu0.b32.cont [4/16] 0.0, 128
    %173 = vxpose.xlu0.b32.cont [5/16] 0.0, 128
    %174 = vxpose.xlu0.b32.cont [6/16] 0.0, 128
    %175 = vxpose.xlu0.b32.cont [7/16] 0.0, 128
    %176 = vxpose.xlu0.b32.cont [8/16] 0.0, 128
    %177 = vxpose.xlu0.b32.cont [9/16] 0.0, 128
    %178 = vxpose.xlu0.b32.cont [10/16] 0.0, 128
    %179 = vxpose.xlu0.b32.cont [11/16] 0.0, 128
    %180 = vxpose.xlu0.b32.cont [12/16] 0.0, 128
    %181 = vxpose.xlu0.b32.cont [13/16] 0.0, 128
    %182 = vxpose.xlu0.b32.cont [14/16] 0.0, 128
    %183 = vxpose.xlu0.b32.cont [15/16] 0.0, 128
    %184 = vxpose.xlu0.b32.end [16/16] 0.0, 128
    %v185 = vpop.trf.xlu0
    %v186 = vpop.trf.xlu0
    %v187 = vpop.trf.xlu0
    %v188 = vpop.trf.xlu0
    %v189 = vpop.trf.xlu0
    %v190 = vpop.trf.xlu0
    %v191 = vpop.trf.xlu0
    %v192 = vpop.trf.xlu0
    %v193 = vpop.trf.xlu0
    %v194 = vpop.trf.xlu0
    %v195 = vpop.trf.xlu0
    %v196 = vpop.trf.xlu0
    %v197 = vpop.trf.xlu0
    %v198 = vpop.trf.xlu0
    %v199 = vpop.trf.xlu0
    %v200 = vpop.trf.xlu0
    %v202 = vsel %vm82, %v185, 0
    %v205 = vsel %vm82, %v186, 0
    %207 = vmatprep.subr.mxu0 0.0
    %208 = vmatpush1.msra.mxu0 0.0
    %209 = vmatprep.subr.mxu0 0.0
    %210 = vmatpush1.msra.mxu0 0.0
    %211 = vmatprep.subr.mxu0 0.0
    %212 = vmatpush1.msra.mxu0 0.0
    %213 = vmatprep.subr.mxu0 0.0
    %214 = vmatpush1.msra.mxu0 0.0
    %215 = vmatprep.subr.mxu0 0.0
    %216 = vmatpush1.msra.mxu0 0.0
    %217 = vmatprep.subr.mxu0 0.0
    %218 = vmatpush1.msra.mxu0 0.0
    %219 = vmatprep.subr.mxu0 0.0
    %220 = vmatpush1.msra.mxu0 0.0
    %221 = vmatprep.subr.mxu0 0.0
    %222 = vmatpush1.msra.mxu0 0.0
    %223 = vmatprep.subr.mxu0 0.0
    %224 = vmatpush1.msra.mxu0 0.0
    %225 = vmatprep.subr.mxu0 0.0
    %226 = vmatpush1.msra.mxu0 0.0
    %227 = vmatprep.subr.mxu0 0.0
    %228 = vmatpush1.msra.mxu0 0.0
    %229 = vmatprep.subr.mxu0 0.0
    %230 = vmatpush1.msra.mxu0 0.0
    %231 = vmatprep.subr.mxu0 0.0
    %232 = vmatpush1.msra.mxu0 0.0
    %233 = vmatprep.subr.mxu0 0.0
    %234 = vmatpush1.msra.mxu0 0.0
    %235 = vmatprep.subr.mxu0 0.0
    %236 = vmatpush1.msra.mxu0 0.0
    %237 = vmatprep.subr.mxu0 0.0
    %238 = vmatpush1.msra.mxu0 %v41
    %239 = vmatprep.subr.mxu0 0.0
    %240 = vmatpush2.msra.mxu0 0.0
    %241 = vmatprep.subr.mxu0 0.0
    %242 = vmatpush2.msra.mxu0 0.0
    %243 = vmatprep.subr.mxu0 0.0
    %244 = vmatpush2.msra.mxu0 0.0
    %245 = vmatprep.subr.mxu0 0.0
    %246 = vmatpush2.msra.mxu0 0.0
    %247 = vmatprep.subr.mxu0 0.0
    %248 = vmatpush2.msra.mxu0 0.0
    %249 = vmatprep.subr.mxu0 0.0
    %250 = vmatpush2.msra.mxu0 0.0
    %251 = vmatprep.subr.mxu0 0.0
    %252 = vmatpush2.msra.mxu0 0.0
    %253 = vmatprep.subr.mxu0 0.0
    %254 = vmatpush2.msra.mxu0 0.0
    %255 = vmatprep.subr.mxu0 0.0
    %256 = vmatpush2.msra.mxu0 0.0
    %257 = vmatprep.subr.mxu0 0.0
    %258 = vmatpush2.msra.mxu0 0.0
    %259 = vmatprep.subr.mxu0 0.0
    %260 = vmatpush2.msra.mxu0 0.0
    %261 = vmatprep.subr.mxu0 0.0
    %262 = vmatpush2.msra.mxu0 0.0
    %263 = vmatprep.subr.mxu0 0.0
    %264 = vmatpush2.msra.mxu0 0.0
    %265 = vmatprep.subr.mxu0 0.0
    %266 = vmatpush2.msra.mxu0 0.0
    %267 = vmatprep.subr.mxu0 0.0
    %268 = vmatpush2.msra.mxu0 0.0
    %269 = vmatprep.subr.mxu0 0.0
    %270 = vmatpush2.msra.mxu0 0.0
    %271 = vmatprep.mubr.f32.mxu0 0.0
    %272 = vmatmul.mubr.f32.gmra.mxu0 %v202
    %v273 = vpop.f32.mrf.mxu0
    %v274 = vadd.f32 %v48, %v273
    %v275 = vpop.f32.mrf.mxu0
    %276 = vmatprep.mubr.f32.mxu0 0.0
    %277 = vmatmul.mubr.f32.gmra.mxu0 %v205
    %v278 = vpop.f32.mrf.mxu0
    %v279 = vadd.f32 %v48, %v278
    %v280 = vpop.f32.mrf.mxu0
    %281 = vdwg.mxu0
    %s282 = scalar_lea.vmem [#allocation7], 16
    %283 = vst.msk [vmem:[%s282] sm:$0xff] %vm164, %v274
    %284 = vst.msk [vmem:[%s282 + $0x8] sm:$0xff] %vm164, %v279
    // Predicated region
    $region22: #{tpu_custom_call.1} parent=1 // pred_check
      _
    $region23: #{tpu_custom_call.1} parent=1 // pred_check_branch
      %286 = sbr.rel (0) target = $region25
    $region24: #{tpu_custom_call.1} parent=1 // pred_region
      %s288 = ssub.s32 512, 512
      %289 = vsyncadd [#allocation4], %s288
      %s290 = sshll.u32 [#allocation7], 4
      %s291 = int_to_ptr.vmem [resolvable:$true] %s290
      %296 = dma.vmem_to_hbm [thread:$0]  %s291, 512, %s3, [#allocation4], 128, 128, 8
    $region25: #{tpu_custom_call.1} parent=1 // pred_fallthru
      _
    // Predicated region
    $region26: #{tpu_custom_call.1} parent=1 // pred_check
      _
    $region27: #{tpu_custom_call.1} parent=1 // pred_check_branch
      %298 = sbr.rel (0) target = $region29
    $region28: #{tpu_custom_call.1} parent=1 // pred_region
      %299 = dma.done [#allocation4], 512
    $region29: #{tpu_custom_call.1} parent=1 // pred_fallthru
      _
    %300 = vsyncpa [#allocation3], 1
    %301 = vsyncpa [#allocation6], 1
    %302 = vsyncpa [#allocation4], 1

</llo_original>
